<compile_context>
chip_gen: v5e
topology: v5e:2x2
jax: 0.10.0
libtpu: 0.0.40
codegen_flags: <defaults>
</compile_context>

<pallas_src>
import functools

import jax
import jax.numpy as jnp
from jax.experimental import pallas as pl
from jax.experimental.pallas import tpu as pltpu


def _label_smoothing_kernel(x_ref, t_ref, o_ref, *,
                            confidence, smoothing, n_rows, mask_rows):
    x = x_ref[...]                                     # [TM, C] input dtype (f32/bf16)
    tm, c = x.shape
    base = smoothing / c                               # smoothing mass per class

    # Numerically stable log-sum-exp along the class (lane) axis.
    # max / subtract stay in the input dtype; exp + accumulation in f32.
    m = jnp.max(x, axis=-1, keepdims=True)             # [TM, 1] input dtype (exact)
    p = jnp.exp((x - m).astype(jnp.float32))           # [TM, C] f32
    lse = jnp.log(jnp.sum(p, axis=-1, keepdims=True)) + m.astype(jnp.float32)

    # Fused weighted row sum: conf * x[target] + (smoothing/C) * sum(x).
    # Target select/compare in the input dtype (exact); sums accumulate in f32.
    tgt = t_ref[...]                                   # [TM, 1] int32
    col = jax.lax.broadcasted_iota(jnp.int32, (tm, c), 1)
    sum_x = jnp.sum(x, axis=-1, keepdims=True, dtype=jnp.float32)
    sum_t = jnp.sum(jnp.where(col == tgt, x, 0.0),
                    axis=-1, keepdims=True, dtype=jnp.float32)
    per_row = lse - (base * sum_x + confidence * sum_t)    # [TM, 1] f32

    if mask_rows:
        # Only the [TM,1] result is masked; garbage (even NaN/Inf) in padded rows of
        # the last block never reaches the output except through this select.
        i = pl.program_id(0)
        row = jax.lax.broadcasted_iota(jnp.int32, (tm, 1), 0) + i * tm
        per_row = jnp.where(row < n_rows, per_row, 0.0)

    partial = jnp.sum(per_row)                         # block partial sum (scalar)

    # Lane-dense unmasked full-tile store; wrapper reads element [0, 0] per tile.
    o_ref[...] = jnp.full(o_ref.shape, partial, dtype=jnp.float32)


def label_smoothing_loss(x, target, smoothing=0.1, block_rows=None):
    """x: [N, C] float (f32 or bf16), target: [N] int. Returns scalar f32 loss."""
    confidence = 1.0 - smoothing
    n, c = x.shape
    t2d = target.astype(jnp.int32).reshape(n, 1)

    itemsize = jnp.dtype(x.dtype).itemsize
    sublane = max(8, 32 // itemsize)                   # 8 f32 / 16 bf16 / 32 int8

    if block_rows is None:
        # Budget ~12 MiB of per-block working set:
        #   2x input block (double-buffered) + ~4 live [TM,C] f32 temporaries.
        per_row_bytes = c * (2 * itemsize + 4 * 4)
        tm = (12 * 1024 * 1024) // max(1, per_row_bytes)
        tm = min(2048, tm)
    else:
        tm = block_rows
    tm = max(sublane, (tm // sublane) * sublane)       # sublane-legal
    n_pad = ((n + sublane - 1) // sublane) * sublane
    tm = min(tm, n_pad)
    num_blocks = pl.cdiv(n, tm)
    mask_rows = (n % tm) != 0                          # static: mask only if needed

    # Scoped VMEM: cover the working set with headroom (>= v5e's 16 MiB default,
    # well under v7x's 64 MiB physical).
    working = 2 * tm * c * itemsize + 4 * tm * c * 4 + (1 << 20)
    vmem_limit = int(min(max(32 << 20, working), 48 << 20))

    kernel = functools.partial(
        _label_smoothing_kernel,
        confidence=confidence, smoothing=smoothing,
        n_rows=n, mask_rows=mask_rows)

    partial_tiles = pl.pallas_call(
        kernel,
        out_shape=jax.ShapeDtypeStruct((num_blocks, 8, 128), jnp.float32),
        grid=(num_blocks,),
        in_specs=[
            pl.BlockSpec((tm, c), lambda i: (i, 0)),
            pl.BlockSpec((tm, 1), lambda i: (i, 0)),
        ],
        out_specs=pl.BlockSpec((1, 8, 128), lambda i: (i, 0, 0)),
        compiler_params=pltpu.CompilerParams(
            dimension_semantics=("parallel",),
            vmem_limit_bytes=vmem_limit),
    )(x, t2d)

    # Finalize the mean in the wrapper: per-block partials -> sum -> / N.
    partials = partial_tiles[:, 0, 0]
    return jnp.sum(partials) * (1.0 / n)


def _reference(x, target, smoothing=0.1):
    confidence = 1.0 - smoothing
    logprobs = jax.nn.log_softmax(x.astype(jnp.float32), axis=-1)
    nll = -jnp.take_along_axis(
        logprobs, target[:, None].astype(jnp.int32), axis=-1)[:, 0]
    smooth = -jnp.mean(logprobs, axis=-1)
    return jnp.mean(confidence * nll + smoothing * smooth)


if __name__ == "__main__":
    key = jax.random.PRNGKey(0)
    kx, kt, kx2, kt2, kx3, kt3 = jax.random.split(key, 6)

    smoothing = 0.1

    # Case 1: small single-block problem (f32).
    N, C = 8, 32
    x = jax.random.normal(kx, (N, C), dtype=jnp.float32)
    target = jax.random.randint(kt, (N,), 0, C, dtype=jnp.int32)
    loss = jax.block_until_ready(label_smoothing_loss(x, target, smoothing=smoothing))
    ref = _reference(x, target, smoothing=smoothing)
    assert jnp.allclose(loss, ref, atol=1e-5, rtol=1e-5), (loss, ref)

    # Case 2: multi-block grid with a partial (masked) last block (f32).
    N2, C2 = 24, 48
    x2 = jax.random.normal(kx2, (N2, C2), dtype=jnp.float32)
    target2 = jax.random.randint(kt2, (N2,), 0, C2, dtype=jnp.int32)
    loss2 = jax.block_until_ready(
        label_smoothing_loss(x2, target2, smoothing=smoothing, block_rows=16))
    ref2 = _reference(x2, target2, smoothing=smoothing)
    assert jnp.allclose(loss2, ref2, atol=1e-5, rtol=1e-5), (loss2, ref2)

    # Case 3: bf16 input, multi-block with a masked last block (dtype-aware tiling:
    # tm rounds to a multiple of 16). Reference computes in f32 on the same bf16 values.
    N3, C3 = 40, 64
    x3 = jax.random.normal(kx3, (N3, C3), dtype=jnp.float32).astype(jnp.bfloat16)
    target3 = jax.random.randint(kt3, (N3,), 0, C3, dtype=jnp.int32)
    loss3 = jax.block_until_ready(
        label_smoothing_loss(x3, target3, smoothing=smoothing, block_rows=16))
    ref3 = _reference(x3, target3, smoothing=smoothing)
    assert jnp.allclose(loss3, ref3, atol=5e-2, rtol=5e-2), (loss3, ref3)

    print("KERNEL_OK")
</pallas_src>

<mosaic_0001>
module attributes {stable_mosaic.version = 11 : i64} {
  func.func @_label_smoothing_kernel(%arg0: i32, %arg1: memref<8x32xf32, #tpu.memory_space<vmem>>, %arg2: memref<8x1xi32, #tpu.memory_space<vmem>>, %arg3: memref<1x8x128xf32, #tpu.memory_space<vmem>>) attributes {dimension_semantics = [#tpu.dimension_semantics<parallel>], iteration_bounds = array<i64: 1>, scalar_prefetch = 0 : i64, scratch_operands = 0 : i64, tpu.core_type = #tpu.core_type<tc>, window_params = [{transform_indices = @transform_0, window_bounds = array<i64: 8, 32>}, {transform_indices = @transform_1, window_bounds = array<i64: 8, 1>}, {transform_indices = @transform_2, window_bounds = array<i64: 1, 8, 128>}]} {
    %c0 = arith.constant 0 : index
    %c0_0 = arith.constant 0 : index
    %0 = vector.load %arg1[%c0, %c0_0] : memref<8x32xf32, #tpu.memory_space<vmem>>, vector<8x32xf32>
    %cst = arith.constant dense<0xFF800000> : vector<8xf32>
    %1 = vector.multi_reduction <maximumf>, %0, %cst [1] : vector<8x32xf32> to vector<8xf32>
    %2 = vector.shape_cast %1 : vector<8xf32> to vector<8x1xf32>
    %3 = vector.broadcast %2 : vector<8x1xf32> to vector<8x32xf32>
    %4 = arith.subf %0, %3 : vector<8x32xf32>
    %5 = math.exp %4 : vector<8x32xf32>
    %cst_1 = arith.constant dense<0.000000e+00> : vector<8xf32>
    %6 = vector.multi_reduction <add>, %5, %cst_1 [1] : vector<8x32xf32> to vector<8xf32>
    %7 = vector.shape_cast %6 : vector<8xf32> to vector<8x1xf32>
    %8 = math.log %7 : vector<8x1xf32>
    %9 = arith.addf %8, %2 : vector<8x1xf32>
    %c0_2 = arith.constant 0 : index
    %c0_3 = arith.constant 0 : index
    %10 = vector.load %arg2[%c0_2, %c0_3] : memref<8x1xi32, #tpu.memory_space<vmem>>, vector<8x1xi32>
    %11 = tpu.iota {dimensions = array<i32: 1>} : vector<8x32xi32>
    %cst_4 = arith.constant dense<0.000000e+00> : vector<8xf32>
    %12 = vector.multi_reduction <add>, %0, %cst_4 [1] : vector<8x32xf32> to vector<8xf32>
    %13 = vector.shape_cast %12 : vector<8xf32> to vector<8x1xf32>
    %14 = vector.broadcast %10 : vector<8x1xi32> to vector<8x32xi32>
    %15 = arith.cmpi eq, %11, %14 : vector<8x32xi32>
    %cst_5 = arith.constant 0.000000e+00 : f32
    %16 = vector.broadcast %cst_5 : f32 to vector<8x32xf32>
    %17 = arith.select %15, %0, %16 : vector<8x32xi1>, vector<8x32xf32>
    %cst_6 = arith.constant dense<0.000000e+00> : vector<8xf32>
    %18 = vector.multi_reduction <add>, %17, %cst_6 [1] : vector<8x32xf32> to vector<8xf32>
    %19 = vector.shape_cast %18 : vector<8xf32> to vector<8x1xf32>
    %cst_7 = arith.constant 3.125000e-03 : f32
    %20 = vector.broadcast %cst_7 : f32 to vector<8x1xf32>
    %21 = arith.mulf %20, %13 : vector<8x1xf32>
    %cst_8 = arith.constant 0.899999976 : f32
    %22 = vector.broadcast %cst_8 : f32 to vector<8x1xf32>
    %23 = arith.mulf %22, %19 : vector<8x1xf32>
    %24 = arith.addf %21, %23 : vector<8x1xf32>
    %25 = arith.subf %9, %24 : vector<8x1xf32>
    %26 = vector.shape_cast %25 : vector<8x1xf32> to vector<1x8x1xf32>
    %cst_9 = arith.constant dense<0.000000e+00> : vector<1xf32>
    %27 = vector.multi_reduction <add>, %26, %cst_9 [1, 2] : vector<1x8x1xf32> to vector<1xf32>
    %28 = vector.shape_cast %27 : vector<1xf32> to vector<1x1x1xf32>
    %29 = vector.extract %28[0, 0, 0] : f32 from vector<1x1x1xf32>
    %30 = vector.broadcast %29 : f32 to vector<1x8x128xf32>
    %c0_10 = arith.constant 0 : index
    %c0_11 = arith.constant 0 : index
    %c0_12 = arith.constant 0 : index
    %31 = vector.load %arg3[%c0_10, %c0_11, %c0_12] : memref<1x8x128xf32, #tpu.memory_space<vmem>>, vector<1x8x128xf32>
    tpu.vector_store %arg3[%c0_10, %c0_11, %c0_12], %30 {strides = array<i32>} : memref<1x8x128xf32, #tpu.memory_space<vmem>>, vector<1x8x128xf32>,
    return
  }
  func.func @transform_0(%arg0: i32) -> (i32, i32) {
    %c0_i32 = arith.constant 0 : i32
    %c0_i32_0 = arith.constant 0 : i32
    return %arg0, %c0_i32 : i32, i32
  }
  func.func @transform_1(%arg0: i32) -> (i32, i32) {
    %c0_i32 = arith.constant 0 : i32
    %c0_i32_0 = arith.constant 0 : i32
    return %arg0, %c0_i32 : i32, i32
  }
  func.func @transform_2(%arg0: i32) -> (i32, i32, i32) {
    %c0_i32 = arith.constant 0 : i32
    %c0_i32_0 = arith.constant 0 : i32
    %c0_i32_1 = arith.constant 0 : i32
    return %arg0, %c0_i32, %c0_i32_0 : i32, i32, i32
  }
}

</mosaic_0001>

<llo_original>
// kernel: tpu_custom_call.1
$region0: #{tpu_custom_call.1}
  #allocation0 [shape = 'u32[]', space=smem, size = 0x4, offset = 0x4, fixed_abs, tag = 'smem constant byte address 0x4 - core index']
  #allocation1 [shape = 'u32[72,128]{1,0:T(1,128)}', space=vmem, size = 0x9000, scoped, tag = 'internal scratch']
  %s0 = inlined_call_operand.vmem [shape: f32[8,32], index: 0, kind: input, shape index: {}]
  %s1 = inlined_call_operand.vmem [shape: s32[8,1], index: 1, kind: input, shape index: {}]
  %s2 = inlined_call_operand.hbm [shape: f32[1,8,128], index: 2, kind: output, shape index: {}]
  %s3 = sld [smem:[#allocation0]]
  $region18: #{tpu_custom_call.1} parent=0
    _
  %s5 = ssub.s32 1, %s3
  %s6 = scalar_select 0, %s5, %s3
  $region1: #{tpu_custom_call.1} parent=0
    #allocation2 [shape = 'u8[4096]{0}', space=vmem, size = 0x1000, scoped, tag = 'output window, operand 0, single buffered']
    #allocation3 [shape = 's32[1]{0}', space=sflag, size = 0x4, scoped, tag = 'scoped memory for tpu_custom_call.1']
    %7 = vsyncpa [#allocation3], 0
    // Predicated region
    $region2: #{tpu_custom_call.1} parent=1 // pred_check
      _
    $region3: #{tpu_custom_call.1} parent=1 // pred_check_branch
      %9 = sbr.rel (0) target = $region5
    $region4: #{tpu_custom_call.1} parent=1 // pred_region
      _
    $region5: #{tpu_custom_call.1} parent=1 // pred_fallthru
      _
    // Predicated region
    $region6: #{tpu_custom_call.1} parent=1 // pred_check
      _
    $region7: #{tpu_custom_call.1} parent=1 // pred_check_branch
      %11 = sbr.rel (0) target = $region9
    $region8: #{tpu_custom_call.1} parent=1 // pred_region
      _
    $region9: #{tpu_custom_call.1} parent=1 // pred_fallthru
      _
    %v12 = vld [vmem:[%s0] sm:$0xff]
    %vm13 = vcmask 261120
    %v14 = vsel %vm13, %v12, -inf
    %15 = vmax.xlane.f32.xlu0 %v14
    %v16 = vpop.xlane.xlu0 %15
    %v17 = vsub.f32 %v12, %v16
    %v18 = vmul.f32 %v17, 1.442695
    %v19 = vpow.pop %v18
    %v20 = vsel %vm13, %v19, 0.0
    %21 = vadd.xlane.f32.xlu0 %v20
    %v22 = vpop.xlane.xlu0 %21
    %v23 = vlog2.pop %v22
    %v24 = vmul.f32 %v23, 0.6931472
    %v25 = vadd.f32 %v24, %v16
    %v26 = vld [vmem:[%s1] sm:$0xff]
    %v27 = vlaneseq
    %v28 = vand.u32 %v27, 127
    %v29 = vsel %vm13, %v12, 0.0
    %30 = vadd.xlane.f32.xlu0 %v29
    %v31 = vpop.xlane.xlu0 %30
    %32 = vset.pattern.permute.xlu0 0
    %33 = vperm.xlu0 %32, %v26
    %v34 = vpop.permute.xlu0 %33
    %vm35 = vcmp.eq.s32.totalorder %v28, %v34
    %v36 = vsel %vm35, %v12, 0.0
    %v37 = vsel %vm13, %v36, 0.0
    %38 = vadd.xlane.f32.xlu0 %v37
    %v39 = vpop.xlane.xlu0 %38
    %v40 = vmul.f32 %v31, 0.003125
    %v41 = vmul.f32 %v39, 0.9
    %v42 = vadd.f32 %v40, %v41
    %v43 = vsub.f32 %v25, %v42
    %vm44 = vcmask 7168
    %v45 = vsel %vm44, %v43, 0.0
    %46 = vadd.xlane.f32.xlu0 %v45
    %v47 = vpop.xlane.xlu0 %46
    %v48 = vrot.slane %v47, 4
    %v49 = vadd.f32 %v47, %v48
    %v50 = vrot.slane %v49, 2
    %v51 = vadd.f32 %v49, %v50
    %v52 = vrot.slane %v51, 1
    %v53 = vadd.f32 %v51, %v52
    %s54 = vtos %v53
    %v55 = vstv %s54
    %56 = vst [vmem:[#allocation2] sm:$0xff] %v55
    // Predicated region
    $region10: #{tpu_custom_call.1} parent=1 // pred_check
      _
    $region11: #{tpu_custom_call.1} parent=1 // pred_check_branch
      %58 = sbr.rel (0) target = $region13
    $region12: #{tpu_custom_call.1} parent=1 // pred_region
      %60 = vsyncadd [#allocation3], 0
      %s62 = sshll.u32 [#allocation2], 4
      %s63 = int_to_ptr.vmem [resolvable:$true] %s62
      %s64 = sshll.u32 %s2, 4
      %s65 = int_to_ptr.hbm [resolvable:$true] %s64
      %67 = dma.vmem_to_hbm [thread:$0]  %s63, 128, %s65, [#allocation3]
    $region13: #{tpu_custom_call.1} parent=1 // pred_fallthru
      _
    // Predicated region
    $region14: #{tpu_custom_call.1} parent=1 // pred_check
      _
    $region15: #{tpu_custom_call.1} parent=1 // pred_check_branch
      %69 = sbr.rel (0) target = $region17
    $region16: #{tpu_custom_call.1} parent=1 // pred_region
      %71 = dma.done [#allocation3], 128
    $region17: #{tpu_custom_call.1} parent=1 // pred_fallthru
      _
    %72 = vsyncpa [#allocation3], 1

</llo_original>
